<compile_context>
chip_gen: v7x
topology: tpu7x:2x2x1
jax: 0.10.0
libtpu: 0.0.40
codegen_flags: <defaults>
</compile_context>

<pallas_src>
import functools

import jax
import jax.numpy as jnp
from jax.experimental import pallas as pl
from jax.experimental.pallas import tpu as pltpu


# ---------------------------------------------------------------- helpers ----
def _gelu(x):
    # exact (erf-based) GELU == torch.nn.functional.gelu default
    return 0.5 * x * (1.0 + jax.lax.erf(x * (1.0 / jnp.sqrt(jnp.float32(2.0)))))


def _round_up(n, m):
    return (n + m - 1) // m * m


# ----------------------------------------------------------------- kernel ----
def _ffn_kernel(x_ref, w1_ref, b1_ref, w2_ref, b2_ref, o_ref, acc_ref,
                *, compute_dtype):
    # grid = (M tiles, F tiles); axis 1 is the reduction over ff_dim.
    k = pl.program_id(1)

    @pl.when(k == 0)
    def _():
        acc_ref[...] = jnp.zeros_like(acc_ref)

    # first matmul: (tm, D) @ (D, tf) -> f32, then bias + exact GELU in f32
    x = x_ref[...].astype(compute_dtype)
    w1 = w1_ref[...].astype(compute_dtype)
    h = jnp.dot(x, w1, preferred_element_type=jnp.float32) + b1_ref[...]
    h = _gelu(h)
    # TODO(synk): nn.Dropout is identity at inference; training-mode stochastic
    #             masking (pltpu.prng_* + mask) is not implemented here.

    # second matmul: accumulate (tm, tf) @ (tf, D) into resident f32 scratch
    w2 = w2_ref[...].astype(compute_dtype)
    acc_ref[...] += jnp.dot(h.astype(compute_dtype), w2,
                            preferred_element_type=jnp.float32)

    @pl.when(k == pl.num_programs(1) - 1)
    def _():
        o_ref[...] = (acc_ref[...] + b2_ref[...]).astype(o_ref.dtype)


# ---------------------------------------------------------------- wrapper ----
def positionwise_feed_forward(x, w1, b1, w2, b2, *,
                              block_m=256, block_f=512,
                              compute_dtype=jnp.bfloat16):
    """y = linear2(dropout(gelu(linear1(x)))) with dropout = identity.

    x: (..., D); w1: (D, F); b1: (F,); w2: (F, D); b2: (D,)
    Weights are stored pre-transposed as (in_features, out_features).
    """
    orig_shape = x.shape
    D = orig_shape[-1]
    F = w1.shape[1]
    assert w1.shape == (D, F) and w2.shape == (F, D)
    assert b1.shape[-1] == F and b2.shape[-1] == D

    x2 = x.reshape(-1, D)
    M = x2.shape[0]

    # lane-dense padding of feature dims, sublane-dense padding of token dim
    D_pad = _round_up(D, 128)
    F_pad = _round_up(F, 128)

    tm = min(block_m, _round_up(M, 8))
    tm = max(8, (tm // 8) * 8)
    M_pad = _round_up(M, tm)

    tf = max(128, (min(block_f, F_pad) // 128) * 128)
    while F_pad % tf:
        tf -= 128

    xp = jnp.pad(x2, ((0, M_pad - M), (0, D_pad - D)))
    w1p = jnp.pad(w1, ((0, D_pad - D), (0, F_pad - F)))
    b1p = jnp.pad(b1.reshape(1, F), ((0, 0), (0, F_pad - F)))
    w2p = jnp.pad(w2, ((0, F_pad - F), (0, D_pad - D)))
    b2p = jnp.pad(b2.reshape(1, D), ((0, 0), (0, D_pad - D)))

    grid = (M_pad // tm, F_pad // tf)

    out = pl.pallas_call(
        functools.partial(_ffn_kernel, compute_dtype=compute_dtype),
        out_shape=jax.ShapeDtypeStruct((M_pad, D_pad), x.dtype),
        grid_spec=pltpu.PrefetchScalarGridSpec(
            num_scalar_prefetch=0,
            grid=grid,
            in_specs=[
                pl.BlockSpec((tm, D_pad), lambda i, k: (i, 0)),   # x tile
                pl.BlockSpec((D_pad, tf), lambda i, k: (0, k)),   # w1 tile
                pl.BlockSpec((1, tf),     lambda i, k: (0, k)),   # b1 tile
                pl.BlockSpec((tf, D_pad), lambda i, k: (k, 0)),   # w2 tile
                pl.BlockSpec((1, D_pad),  lambda i, k: (0, 0)),   # b2
            ],
            out_specs=pl.BlockSpec((tm, D_pad), lambda i, k: (i, 0)),
            scratch_shapes=[pltpu.VMEM((tm, D_pad), jnp.float32)],
        ),
        compiler_params=pltpu.CompilerParams(
            dimension_semantics=("parallel", "arbitrary")),
    )(xp, w1p, b1p, w2p, b2p)

    return out[:M, :D].reshape(orig_shape)


# ------------------------------------------------------ plain-JAX reference ----
def ref_ffn(x, w1, b1, w2, b2):
    # dropout = identity at inference
    return _gelu(x @ w1 + b1) @ w2 + b2


# ------------------------------------------------------------------- main ----
if __name__ == "__main__":
    B, S, embed_dim, ff_dim = 2, 8, 32, 256

    key = jax.random.PRNGKey(0)
    kx, k1, k2, k3, k4 = jax.random.split(key, 5)
    x = jax.random.normal(kx, (B, S, embed_dim), jnp.float32)

    # PyTorch nn.Linear init: U(-1/sqrt(fan_in), 1/sqrt(fan_in)), weights stored (in, out)
    b1_bound = embed_dim ** -0.5
    w1 = jax.random.uniform(k1, (embed_dim, ff_dim), jnp.float32, -b1_bound, b1_bound)
    b1 = jax.random.uniform(k2, (ff_dim,), jnp.float32, -b1_bound, b1_bound)
    b2_bound = ff_dim ** -0.5
    w2 = jax.random.uniform(k3, (ff_dim, embed_dim), jnp.float32, -b2_bound, b2_bound)
    b2 = jax.random.uniform(k4, (embed_dim,), jnp.float32, -b2_bound, b2_bound)

    # small tiles so the toy shapes exercise a real 2x2 grid (2 token tiles x 2 ff tiles)
    y_bf16 = positionwise_feed_forward(x, w1, b1, w2, b2,
                                       block_m=8, block_f=128,
                                       compute_dtype=jnp.bfloat16)
    y_f32 = positionwise_feed_forward(x, w1, b1, w2, b2,
                                      block_m=8, block_f=128,
                                      compute_dtype=jnp.float32)
    jax.block_until_ready((y_bf16, y_f32))

    y_ref = ref_ffn(x, w1, b1, w2, b2)

    assert y_bf16.shape == x.shape and y_f32.shape == x.shape
    assert jnp.allclose(y_f32, y_ref, atol=2e-3, rtol=2e-3)
    assert jnp.allclose(y_bf16, y_ref, atol=2e-2, rtol=2e-2)

    print("KERNEL_OK")
</pallas_src>

<mosaic_0001>
module attributes {stable_mosaic.version = 11 : i64} {
  func.func @_ffn_kernel(%arg0: i32, %arg1: i32, %arg2: memref<8x128xf32, #tpu.memory_space<vmem>>, %arg3: memref<128x128xf32, #tpu.memory_space<vmem>>, %arg4: memref<1x128xf32, #tpu.memory_space<vmem>>, %arg5: memref<128x128xf32, #tpu.memory_space<vmem>>, %arg6: memref<1x128xf32, #tpu.memory_space<vmem>>, %arg7: memref<8x128xf32, #tpu.memory_space<vmem>>, %arg8: memref<8x128xf32, #tpu.memory_space<vmem>>) attributes {dimension_semantics = [#tpu.dimension_semantics<parallel>, #tpu.dimension_semantics<arbitrary>], iteration_bounds = array<i64: 2, 2>, scalar_prefetch = 0 : i64, scratch_operands = 1 : i64, tpu.core_type = #tpu.core_type<tc>, window_params = [{transform_indices = @transform_0, window_bounds = array<i64: 8, 128>}, {transform_indices = @transform_1, window_bounds = array<i64: 128, 128>}, {transform_indices = @transform_2, window_bounds = array<i64: 1, 128>}, {transform_indices = @transform_3, window_bounds = array<i64: 128, 128>}, {pipeline_mode = #tpu.pipeline_mode<synchronous>, transform_indices = @transform_4, window_bounds = array<i64: 1, 128>}, {transform_indices = @transform_5, window_bounds = array<i64: 8, 128>}]} {
    %c0_i32 = arith.constant 0 : i32
    %0 = arith.cmpi eq, %arg1, %c0_i32 : i32
    %1 = arith.extui %0 : i1 to i32
    %c0_i32_0 = arith.constant 0 : i32
    %2 = arith.cmpi ne, %1, %c0_i32_0 : i32
    scf.if %2 {
      %cst_18 = arith.constant 0.000000e+00 : f32
      %31 = vector.broadcast %cst_18 : f32 to vector<8x128xf32>
      %c0_19 = arith.constant 0 : index
      %c0_20 = arith.constant 0 : index
      %32 = vector.load %arg8[%c0_19, %c0_20] : memref<8x128xf32, #tpu.memory_space<vmem>>, vector<8x128xf32>
      tpu.vector_store %arg8[%c0_19, %c0_20], %31 {strides = array<i32>} : memref<8x128xf32, #tpu.memory_space<vmem>>, vector<8x128xf32>,
    } else {
    }
    %c0 = arith.constant 0 : index
    %c0_1 = arith.constant 0 : index
    %3 = vector.load %arg2[%c0, %c0_1] : memref<8x128xf32, #tpu.memory_space<vmem>>, vector<8x128xf32>
    %4 = arith.truncf %3 : vector<8x128xf32> to vector<8x128xbf16>
    %c0_2 = arith.constant 0 : index
    %c0_3 = arith.constant 0 : index
    %5 = vector.load %arg3[%c0_2, %c0_3] : memref<128x128xf32, #tpu.memory_space<vmem>>, vector<128x128xf32>
    %6 = arith.truncf %5 : vector<128x128xf32> to vector<128x128xbf16>
    %cst = arith.constant dense<0.000000e+00> : vector<8x128xf32>
    %7 = tpu.matmul %4, %6, %cst {dimension_numbers = #tpu.dot_dimension_numbers<[1], [0], [0], [1], [0, 0, 1, 1], [], []>} : vector<8x128xbf16>, vector<128x128xbf16>, vector<8x128xf32> -> vector<8x128xf32>
    %c0_4 = arith.constant 0 : index
    %c0_5 = arith.constant 0 : index
    %8 = vector.load %arg4[%c0_4, %c0_5] : memref<1x128xf32, #tpu.memory_space<vmem>>, vector<1x128xf32>
    %9 = vector.broadcast %8 : vector<1x128xf32> to vector<8x128xf32>
    %10 = arith.addf %7, %9 : vector<8x128xf32>
    %cst_6 = arith.constant 5.000000e-01 : f32
    %11 = vector.broadcast %cst_6 : f32 to vector<8x128xf32>
    %12 = arith.mulf %11, %10 : vector<8x128xf32>
    %cst_7 = arith.constant 2.000000e+00 : f32
    %13 = math.sqrt %cst_7 : f32
    %cst_8 = arith.constant 1.000000e+00 : f32
    %14 = arith.divf %cst_8, %13 : f32
    %15 = vector.broadcast %14 : f32 to vector<8x128xf32>
    %16 = arith.mulf %10, %15 : vector<8x128xf32>
    %17 = math.erf %16 : vector<8x128xf32>
    %cst_9 = arith.constant 1.000000e+00 : f32
    %18 = vector.broadcast %cst_9 : f32 to vector<8x128xf32>
    %19 = arith.addf %18, %17 : vector<8x128xf32>
    %20 = arith.mulf %12, %19 : vector<8x128xf32>
    %c0_10 = arith.constant 0 : index
    %c0_11 = arith.constant 0 : index
    %21 = vector.load %arg5[%c0_10, %c0_11] : memref<128x128xf32, #tpu.memory_space<vmem>>, vector<128x128xf32>
    %22 = arith.truncf %21 : vector<128x128xf32> to vector<128x128xbf16>
    %c0_12 = arith.constant 0 : index
    %c0_13 = arith.constant 0 : index
    %23 = vector.load %arg8[%c0_12, %c0_13] : memref<8x128xf32, #tpu.memory_space<vmem>>, vector<8x128xf32>
    %24 = arith.truncf %20 : vector<8x128xf32> to vector<8x128xbf16>
    %cst_14 = arith.constant dense<0.000000e+00> : vector<8x128xf32>
    %25 = tpu.matmul %24, %22, %cst_14 {dimension_numbers = #tpu.dot_dimension_numbers<[1], [0], [0], [1], [0, 0, 1, 1], [], []>} : vector<8x128xbf16>, vector<128x128xbf16>, vector<8x128xf32> -> vector<8x128xf32>
    %26 = arith.addf %23, %25 : vector<8x128xf32>
    %c0_15 = arith.constant 0 : index
    %c0_16 = arith.constant 0 : index
    %27 = vector.load %arg8[%c0_15, %c0_16] : memref<8x128xf32, #tpu.memory_space<vmem>>, vector<8x128xf32>
    tpu.vector_store %arg8[%c0_15, %c0_16], %26 {strides = array<i32>} : memref<8x128xf32, #tpu.memory_space<vmem>>, vector<8x128xf32>,
    %c1_i32 = arith.constant 1 : i32
    %28 = arith.cmpi eq, %arg1, %c1_i32 : i32
    %29 = arith.extui %28 : i1 to i32
    %c0_i32_17 = arith.constant 0 : i32
    %30 = arith.cmpi ne, %29, %c0_i32_17 : i32
    scf.if %30 {
      %c0_18 = arith.constant 0 : index
      %c0_19 = arith.constant 0 : index
      %31 = vector.load %arg8[%c0_18, %c0_19] : memref<8x128xf32, #tpu.memory_space<vmem>>, vector<8x128xf32>
      %c0_20 = arith.constant 0 : index
      %c0_21 = arith.constant 0 : index
      %32 = vector.load %arg6[%c0_20, %c0_21] : memref<1x128xf32, #tpu.memory_space<vmem>>, vector<1x128xf32>
      %33 = vector.broadcast %32 : vector<1x128xf32> to vector<8x128xf32>
      %34 = arith.addf %31, %33 : vector<8x128xf32>
      %c0_22 = arith.constant 0 : index
      %c0_23 = arith.constant 0 : index
      %35 = vector.load %arg7[%c0_22, %c0_23] : memref<8x128xf32, #tpu.memory_space<vmem>>, vector<8x128xf32>
      tpu.vector_store %arg7[%c0_22, %c0_23], %34 {strides = array<i32>} : memref<8x128xf32, #tpu.memory_space<vmem>>, vector<8x128xf32>,
    } else {
    }
    return
  }
  func.func @transform_0(%arg0: i32, %arg1: i32) -> (i32, i32) {
    %c0_i32 = arith.constant 0 : i32
    %c0_i32_0 = arith.constant 0 : i32
    return %arg0, %c0_i32 : i32, i32
  }
  func.func @transform_1(%arg0: i32, %arg1: i32) -> (i32, i32) {
    %c0_i32 = arith.constant 0 : i32
    %c0_i32_0 = arith.constant 0 : i32
    return %c0_i32, %arg1 : i32, i32
  }
  func.func @transform_2(%arg0: i32, %arg1: i32) -> (i32, i32) {
    %c0_i32 = arith.constant 0 : i32
    %c0_i32_0 = arith.constant 0 : i32
    return %c0_i32, %arg1 : i32, i32
  }
  func.func @transform_3(%arg0: i32, %arg1: i32) -> (i32, i32) {
    %c0_i32 = arith.constant 0 : i32
    %c0_i32_0 = arith.constant 0 : i32
    return %arg1, %c0_i32 : i32, i32
  }
  func.func @transform_4(%arg0: i32, %arg1: i32) -> (i32, i32) {
    %c0_i32 = arith.constant 0 : i32
    %c0_i32_0 = arith.constant 0 : i32
    %c0_i32_1 = arith.constant 0 : i32
    return %c0_i32, %c0_i32_0 : i32, i32
  }
  func.func @transform_5(%arg0: i32, %arg1: i32) -> (i32, i32) {
    %c0_i32 = arith.constant 0 : i32
    %c0_i32_0 = arith.constant 0 : i32
    return %arg0, %c0_i32 : i32, i32
  }
}

</mosaic_0001>

<llo_original>
// kernel: tpu_custom_call.1
$region0: #{tpu_custom_call.1}
  #allocation0 [shape = 'u32[]', space=smem, size = 0x4, offset = 0x4, fixed_abs, tag = 'smem constant byte address 0x4 - core index']
  #allocation1 [shape = 'u32[144,128]{1,0:T(1,128)}', space=vmem, size = 0x12000, scoped, tag = 'internal scratch']
  #allocation2 [shape = 'f32[8,128]{1,0:T(8,128)}', space=vmem, size = 0x1000, scoped, tag = 'scratch operand']
  %s0 = inlined_call_operand.hbm [shape: f32[16,128], index: 0, kind: input, shape index: {}]
  %s1 = inlined_call_operand.hbm [shape: f32[128,256], index: 1, kind: input, shape index: {}]
  %s2 = inlined_call_operand.vmem [shape: f32[1,256], index: 2, kind: input, shape index: {}]
  %s3 = inlined_call_operand.hbm [shape: f32[256,128], index: 3, kind: input, shape index: {}]
  %s4 = inlined_call_operand.vmem [shape: f32[1,128], index: 4, kind: input, shape index: {}]
  %s5 = inlined_call_operand.hbm [shape: f32[16,128], index: 5, kind: output, shape index: {}]
  %s6 = sld [smem:[#allocation0]]
  $region73: #{tpu_custom_call.1} parent=0
    _
  %s8 = ssub.s32 1, %s6
  %s9 = scalar_select 0, %s8, %s6
  $region1: #{tpu_custom_call.1} parent=0
    #allocation3 [shape = 'u8[8192]{0}', space=vmem, size = 0x2000, scoped, tag = 'input window, operand 0']
    #allocation4 [shape = 's32[2]{0}', space=sflag, size = 0x8, scoped, tag = 'scoped memory for tpu_custom_call.1']
    #allocation5 [shape = 's32[2]{0}', space=sflag, size = 0x8, scoped, tag = 'scoped memory for tpu_custom_call.1']
    #allocation6 [shape = 'u8[131072]{0}', space=vmem, size = 0x20000, scoped, tag = 'input window, operand 1']
    #allocation7 [shape = 's32[2]{0}', space=sflag, size = 0x8, scoped, tag = 'scoped memory for tpu_custom_call.1']
    #allocation8 [shape = 'u8[131072]{0}', space=vmem, size = 0x20000, scoped, tag = 'input window, operand 3']
    #allocation9 [shape = 'u8[8192]{0}', space=vmem, size = 0x2000, scoped, tag = 'output window, operand 0']
    %10 = vsyncpa [#allocation4], 0
    %s11 = scalar_lea.sflag [#allocation4], 1
    %12 = vsyncpa %s11, 0
    %13 = vsyncpa [#allocation7], 0
    %s14 = scalar_lea.sflag [#allocation7], 1
    %15 = vsyncpa %s14, 0
    %16 = vsyncpa [#allocation5], 0
    %s17 = scalar_lea.sflag [#allocation5], 1
    %18 = vsyncpa %s17, 0
    loop: start=0, step=1, limit=6
    $region2: #{tpu_custom_call.1} parent=1 // loop_pre_header
      _
    $region3: #{tpu_custom_call.1} parent=1 // loop_header
      %s20 = sphi 0, %s24
      %p21 = scmp.ge.s32.totalorder %s20, 6
      %s27 = sphi 0, %s39
      %s28 = sphi 0, %s35
      %s29 = sphi 0, %s27
      %s30 = sphi 0, %s28
      %s31 = sphi 0, %s29
      %s32 = sphi 0, %s30
      %s42 = sphi 0, %s44
      %s45 = sphi 0, %s42
      %s46 = sphi 0, %s45
      %s62 = sphi 0, %s46
      %s68 = sphi 0, %s70
      %s71 = sphi 0, %s68
      %s72 = sphi 0, %s71
      %s88 = sphi 0, %s72
      %s94 = sphi 0, %s96
      %s97 = sphi 0, %s94
      %s98 = sphi 0, %s97
      %s114 = sphi 0, %s98
      %s120 = sphi 0, %s122
      %s123 = sphi 0, %s120
      %s124 = sphi 0, %s123
      %s140 = sphi 0, %s124
      %s144 = sphi 0, %s144
      %s146 = sphi 0, %s144
      %s147 = sphi 0, %s146
      %s161 = sphi 0, %s147
      %s167 = sphi 0, %s169
      %s170 = sphi 0, %s167
      %s171 = sphi 0, %s170
      %s187 = sphi 0, %s171
    $region4: #{tpu_custom_call.1} parent=1 // loop_header_branch
      %23 = sbr.rel (%p21) target = $region8
    $region5: #{tpu_custom_call.1} parent=1 // loop_body
      %s25 = ssub.s32 %s20, 1
      %s26 = ssub.s32 %s20, 2
      %s33 = sadd.s32 1, %s28
      %p34 = scmp.ge.s32.totalorder %s33, 2
      %s35 = scalar_select %p34, 0, %s33
      %s36 = sadd.s32 1, %s27
      %s37 = scalar_select %p34, %s36, %s27
      %p38 = scmp.ge.s32.totalorder %s37, 2
      %s39 = scalar_select %p38, 0, %s37
      %s40 = ssub.s32 %s27, %s39
      %p41 = scmp.eq.s32.totalorder %s40, 0
      %s43 = sadd.s32 %s42, 1
      %s44 = scalar_select %p41, %s42, %s43
      %p47 = pneg %p41
      %p48 = scmp.eq.s32.totalorder %s20, 3
      %p49 = por %p47, %p48
      %p50 = scmp.ne.s32.totalorder %s42, %s45
      %p51 = scmp.eq.s32.totalorder %s20, 0
      %p52 = por %p50, %p51
      %p53 = scmp.ne.s32.totalorder %s42, %s45
      %p54 = scmp.eq.s32.totalorder %s25, 3
      %p55 = por %p53, %p54
      %p56 = scmp.ne.s32.totalorder %s45, %s46
      %p57 = scmp.eq.s32.totalorder %s25, 0
      %p58 = por %p56, %p57
      %p59 = scmp.ne.s32.totalorder %s45, %s46
      %p60 = scmp.eq.s32.totalorder %s26, 3
      %p61 = por %p59, %p60
      %p63 = scmp.ne.s32.totalorder %s46, %s62
      %p64 = scmp.eq.s32.totalorder %s26, 0
      %p65 = por %p63, %p64
      %s66 = ssub.s32 %s28, %s35
      %p67 = scmp.eq.s32.totalorder %s66, 0
      %s69 = sadd.s32 %s68, 1
      %s70 = scalar_select %p67, %s68, %s69
      %p73 = pneg %p67
      %p74 = scmp.eq.s32.totalorder %s20, 3
      %p75 = por %p73, %p74
      %p76 = scmp.ne.s32.totalorder %s68, %s71
      %p77 = scmp.eq.s32.totalorder %s20, 0
      %p78 = por %p76, %p77
      %p79 = scmp.ne.s32.totalorder %s68, %s71
      %p80 = scmp.eq.s32.totalorder %s25, 3
      %p81 = por %p79, %p80
      %p82 = scmp.ne.s32.totalorder %s71, %s72
      %p83 = scmp.eq.s32.totalorder %s25, 0
      %p84 = por %p82, %p83
      %p85 = scmp.ne.s32.totalorder %s71, %s72
      %p86 = scmp.eq.s32.totalorder %s26, 3
      %p87 = por %p85, %p86
      %p89 = scmp.ne.s32.totalorder %s72, %s88
      %p90 = scmp.eq.s32.totalorder %s26, 0
      %p91 = por %p89, %p90
      %s92 = ssub.s32 %s28, %s35
      %p93 = scmp.eq.s32.totalorder %s92, 0
      %s95 = sadd.s32 %s94, 1
      %s96 = scalar_select %p93, %s94, %s95
      %p99 = pneg %p93
      %p100 = scmp.eq.s32.totalorder %s20, 3
      %p101 = por %p99, %p100
      %p102 = scmp.ne.s32.totalorder %s94, %s97
      %p103 = scmp.eq.s32.totalorder %s20, 0
      %p104 = por %p102, %p103
      %p105 = scmp.ne.s32.totalorder %s94, %s97
      %p106 = scmp.eq.s32.totalorder %s25, 3
      %p107 = por %p105, %p106
      %p108 = scmp.ne.s32.totalorder %s97, %s98
      %p109 = scmp.eq.s32.totalorder %s25, 0
      %p110 = por %p108, %p109
      %p111 = scmp.ne.s32.totalorder %s97, %s98
      %p112 = scmp.eq.s32.totalorder %s26, 3
      %p113 = por %p111, %p112
      %p115 = scmp.ne.s32.totalorder %s98, %s114
      %p116 = scmp.eq.s32.totalorder %s26, 0
      %p117 = por %p115, %p116
      %s118 = ssub.s32 %s28, %s35
      %p119 = scmp.eq.s32.totalorder %s118, 0
      %s121 = sadd.s32 %s120, 1
      %s122 = scalar_select %p119, %s120, %s121
      %p125 = pneg %p119
      %p126 = scmp.eq.s32.totalorder %s20, 3
      %p127 = por %p125, %p126
      %p128 = scmp.ne.s32.totalorder %s120, %s123
      %p129 = scmp.eq.s32.totalorder %s20, 0
      %p130 = por %p128, %p129
      %p131 = scmp.ne.s32.totalorder %s120, %s123
      %p132 = scmp.eq.s32.totalorder %s25, 3
      %p133 = por %p131, %p132
      %p134 = scmp.ne.s32.totalorder %s123, %s124
      %p135 = scmp.eq.s32.totalorder %s25, 0
      %p136 = por %p134, %p135
      %p137 = scmp.ne.s32.totalorder %s123, %s124
      %p138 = scmp.eq.s32.totalorder %s26, 3
      %p139 = por %p137, %p138
      %p141 = scmp.ne.s32.totalorder %s124, %s140
      %p142 = scmp.eq.s32.totalorder %s26, 0
      %p143 = por %p141, %p142
      %s145 = sadd.s32 %s144, 1
      %p148 = scmp.eq.s32.totalorder %s20, 3
      %p149 = scmp.ne.s32.totalorder %s144, %s146
      %p150 = scmp.eq.s32.totalorder %s20, 0
      %p151 = por %p149, %p150
      %p152 = scmp.ne.s32.totalorder %s144, %s146
      %p153 = scmp.eq.s32.totalorder %s25, 3
      %p154 = por %p152, %p153
      %p155 = scmp.ne.s32.totalorder %s146, %s147
      %p156 = scmp.eq.s32.totalorder %s25, 0
      %p157 = por %p155, %p156
      %p158 = scmp.ne.s32.totalorder %s146, %s147
      %p159 = scmp.eq.s32.totalorder %s26, 3
      %p160 = por %p158, %p159
      %p162 = scmp.ne.s32.totalorder %s147, %s161
      %p163 = scmp.eq.s32.totalorder %s26, 0
      %p164 = por %p162, %p163
      %s165 = ssub.s32 %s27, %s39
      %p166 = scmp.eq.s32.totalorder %s165, 0
      %s168 = sadd.s32 %s167, 1
      %s169 = scalar_select %p166, %s167, %s168
      %p172 = pneg %p166
      %p173 = scmp.eq.s32.totalorder %s20, 3
      %p174 = por %p172, %p173
      %p175 = scmp.ne.s32.totalorder %s167, %s170
      %p176 = scmp.eq.s32.totalorder %s20, 0
      %p177 = por %p175, %p176
      %p178 = scmp.ne.s32.totalorder %s167, %s170
      %p179 = scmp.eq.s32.totalorder %s25, 3
      %p180 = por %p178, %p179
      %p181 = scmp.ne.s32.totalorder %s170, %s171
      %p182 = scmp.eq.s32.totalorder %s25, 0
      %p183 = por %p181, %p182
      %p184 = scmp.ne.s32.totalorder %s170, %s171
      %p185 = scmp.eq.s32.totalorder %s26, 3
      %p186 = por %p184, %p185
      %p188 = scmp.ne.s32.totalorder %s171, %s187
      %p189 = scmp.eq.s32.totalorder %s26, 0
      %p190 = por %p188, %p189
      %p191 = scmp.le.s32.totalorder 1, %s20
      %p192 = scmp.lt.s32.totalorder %s20, 5
      %p193 = pnand %p191, %p192
      %p194 = pneg %p193
      // Predicated region
      $region9: #{tpu_custom_call.1} parent=5 // pred_check
        _
      $region10: #{tpu_custom_call.1} parent=5 // pred_check_branch
        %196 = sbr.rel (%p193) target = $region12
      $region11: #{tpu_custom_call.1} parent=5 // pred_region
        %s197 = ssub.s32 %s20, 1
        // Predicated region
        $region13: #{tpu_custom_call.1} parent=11 // pred_check
          %p198 = pneg %p157
        $region14: #{tpu_custom_call.1} parent=11 // pred_check_branch
          %200 = sbr.rel (%p198) target = $region16
        $region15: #{tpu_custom_call.1} parent=11 // pred_region
          _
        $region16: #{tpu_custom_call.1} parent=11 // pred_fallthru
          _
      $region12: #{tpu_custom_call.1} parent=5 // pred_fallthru
        _
      %p201 = scmp.lt.s32.totalorder %s20, 4
      // Predicated region
      $region17: #{tpu_custom_call.1} parent=5 // pred_check
        %p202 = pneg %p201
      $region18: #{tpu_custom_call.1} parent=5 // pred_check_branch
        %204 = sbr.rel (%p202) target = $region20
      $region19: #{tpu_custom_call.1} parent=5 // pred_region
        // Predicated region
        $region21: #{tpu_custom_call.1} parent=19 // pred_check
          %p205 = pneg %p52
        $region22: #{tpu_custom_call.1} parent=19 // pred_check_branch
          %207 = sbr.rel (%p205) target = $region24
        $region23: #{tpu_custom_call.1} parent=19 // pred_region
          %s208 = sand.u32 %s42, 1
          %s209 = scalar_lea.sflag [#allocation4], %s208
          %s210 = sand.u32 %s42, 1
          %s211 = smul.addr %s210, 8
          %s212 = scalar_lea.vmem [#allocation3], %s211
          %s214 = ssub.s32 128, 128
          %215 = vsyncadd %s209, %s214
          %s216 = smul.addr %s27, 128
          %s217 = scalar_lea.hbm %s0, %s216
          %s219 = sshll.u32 %s212, 4
          %s220 = int_to_ptr.vmem [resolvable:$true] %s219
          %222 = dma.hbm_to_vmem [thread:$0]  %s217, 128, %s220, %s209
        $region24: #{tpu_custom_call.1} parent=19 // pred_fallthru
          _
        // Predicated region
        $region25: #{tpu_custom_call.1} parent=19 // pred_check
          %p223 = pneg %p78
        $region26: #{tpu_custom_call.1} parent=19 // pred_check_branch
          %225 = sbr.rel (%p223) target = $region28
        $region27: #{tpu_custom_call.1} parent=19 // pred_region
          %s226 = sand.u32 %s20, 1
          %s227 = scalar_lea.sflag [#allocation7], %s226
          %s228 = sand.u32 %s68, 1
          %s229 = smul.addr %s228, 128
          %s230 = scalar_lea.vmem [#allocation6], %s229
          %s232 = ssub.s32 2048, 2048
          %233 = vsyncadd %s227, %s232
          %s234 = smul.addr %s28, 128
          %s235 = scalar_lea.hbm %s1, %s234
          %s236 = sshll.u32 %s230, 4
          %s237 = int_to_ptr.vmem [resolvable:$true] %s236
          %242 = dma.hbm_to_vmem [thread:$0]  %s235, 2048, %s237, %s227, 256, 128, 8
        $region28: #{tpu_custom_call.1} parent=19 // pred_fallthru
          _
        // Predicated region
        $region29: #{tpu_custom_call.1} parent=19 // pred_check
          %p243 = pneg %p104
        $region30: #{tpu_custom_call.1} parent=19 // pred_check_branch
          %245 = sbr.rel (%p243) target = $region32
        $region31: #{tpu_custom_call.1} parent=19 // pred_region
          %p246 = scmp.lt.s32.totalorder %s28, 1
          %s247 = scalar_select %p246, %s28, 1
          %s248 = scalar_lea.vmem %s2, %s247
        $region32: #{tpu_custom_call.1} parent=19 // pred_fallthru
          _
        // Predicated region
        $region33: #{tpu_custom_call.1} parent=19 // pred_check
          %p249 = pneg %p130
        $region34: #{tpu_custom_call.1} parent=19 // pred_check_branch
          %251 = sbr.rel (%p249) target = $region36
        $region35: #{tpu_custom_call.1} parent=19 // pred_region
          %s252 = sand.u32 %s20, 1
          %s253 = scalar_lea.sflag [#allocation7], %s252
          %s254 = sand.u32 %s120, 1
          %s255 = smul.addr %s254, 128
          %s256 = scalar_lea.vmem [#allocation8], %s255
          %s257 = smul.u32 16, %s28
          %s259 = ssub.s32 2048, 2048
          %260 = vsyncadd %s253, %s259
          %s261 = smul.addr %s257, 128
          %s262 = scalar_lea.hbm %s3, %s261
          %s263 = sshll.u32 %s256, 4
          %s264 = int_to_ptr.vmem [resolvable:$true] %s263
          %269 = dma.hbm_to_vmem [thread:$0]  %s262, 2048, %s264, %s253, 128, 128, 8
        $region36: #{tpu_custom_call.1} parent=19 // pred_fallthru
          _
      $region20: #{tpu_custom_call.1} parent=5 // pred_fallthru
        _
      %p270 = scmp.le.s32.totalorder 1, %s20
      %p271 = scmp.lt.s32.totalorder %s20, 5
      %p272 = pnand %p270, %p271
      %p273 = pneg %p272
      // Predicated region
      $region37: #{tpu_custom_call.1} parent=5 // pred_check
        _
      $region38: #{tpu_custom_call.1} parent=5 // pred_check_branch
        %275 = sbr.rel (%p272) target = $region40
      $region39: #{tpu_custom_call.1} parent=5 // pred_region
        %s276 = ssub.s32 %s20, 1
        %s277 = sand.u32 %s45, 1
        %s278 = scalar_lea.sflag [#allocation4], %s277
        %s279 = sand.u32 %s45, 1
        %s280 = smul.addr %s279, 8
        %s281 = scalar_lea.vmem [#allocation3], %s280
        // Predicated region
        $region41: #{tpu_custom_call.1} parent=39 // pred_check
          %p282 = pneg %p58
        $region42: #{tpu_custom_call.1} parent=39 // pred_check_branch
          %284 = sbr.rel (%p282) target = $region44
        $region43: #{tpu_custom_call.1} parent=39 // pred_region
          %285 = dma.done %s278, 128
        $region44: #{tpu_custom_call.1} parent=39 // pred_fallthru
          _
        %s286 = sand.u32 %s25, 1
        %s287 = scalar_lea.sflag [#allocation7], %s286
        %s288 = sand.u32 %s71, 1
        %s289 = smul.addr %s288, 128
        %s290 = scalar_lea.vmem [#allocation6], %s289
        // Predicated region
        $region45: #{tpu_custom_call.1} parent=39 // pred_check
          %p291 = pneg %p84
        $region46: #{tpu_custom_call.1} parent=39 // pred_check_branch
          %293 = sbr.rel (%p291) target = $region48
        $region47: #{tpu_custom_call.1} parent=39 // pred_region
          %294 = dma.done %s287, 2048
        $region48: #{tpu_custom_call.1} parent=39 // pred_fallthru
          _
        %s295 = sand.u32 %s25, 1
        %s296 = scalar_lea.sflag [#allocation7], %s295
        %s297 = sand.u32 %s123, 1
        %s298 = smul.addr %s297, 128
        %s299 = scalar_lea.vmem [#allocation8], %s298
        // Predicated region
        $region49: #{tpu_custom_call.1} parent=39 // pred_check
          %p300 = pneg %p136
        $region50: #{tpu_custom_call.1} parent=39 // pred_check_branch
          %302 = sbr.rel (%p300) target = $region52
        $region51: #{tpu_custom_call.1} parent=39 // pred_region
          %303 = dma.done %s296, 2048
        $region52: #{tpu_custom_call.1} parent=39 // pred_fallthru
          _
        %s304 = sand.u32 %s45, 1
        %s305 = scalar_lea.sflag [#allocation4], %s304
        %s306 = sand.u32 %s45, 1
        %s307 = smul.addr %s306, 8
        %s308 = scalar_lea.vmem [#allocation3], %s307
        %p309 = pneg %p58
        %p310 = pneg %p55
        %s311 = sand.u32 %s25, 1
        %s312 = scalar_lea.sflag [#allocation7], %s311
        %s313 = sand.u32 %s71, 1
        %s314 = smul.addr %s313, 128
        %s315 = scalar_lea.vmem [#allocation6], %s314
        %p316 = pneg %p84
        %p317 = pneg %p81
        %p318 = scmp.lt.s32.totalorder %s30, 1
        %s319 = scalar_select %p318, %s30, 1
        %s320 = scalar_lea.vmem %s2, %s319
        %p321 = pneg %p110
        %p322 = pneg %p107
        %s323 = sand.u32 %s25, 1
        %s324 = scalar_lea.sflag [#allocation7], %s323
        %s325 = sand.u32 %s123, 1
        %s326 = smul.addr %s325, 128
        %s327 = scalar_lea.vmem [#allocation8], %s326
        %p328 = pneg %p136
        %p329 = pneg %p133
        %p330 = pneg %p157
        %p331 = pneg %p154
        %p332 = pneg %p183
        %p333 = pneg %p180
        %s334 = sand.u32 %s170, 1
        %s335 = scalar_lea.sflag [#allocation5], %s334
        %s336 = sand.u32 %s170, 1
        %s337 = smul.addr %s336, 8
        %s338 = scalar_lea.vmem [#allocation9], %s337
        %p339 = scmp.lt.s32.totalorder %s30, 1
        %s340 = scalar_select %p339, %s30, 1
        %s341 = scalar_lea.vmem %s2, %s340
        %s342 = smul.u32 16, %s30
        %p344 = scmp.eq.s32.totalorder %s30, 0
        // Predicated region
        $region53: #{tpu_custom_call.1} parent=39 // pred_check
          %p345 = pneg %p344
        $region54: #{tpu_custom_call.1} parent=39 // pred_check_branch
          %347 = sbr.rel (%p345) target = $region56
        $region55: #{tpu_custom_call.1} parent=39 // pred_region
          %348 = vst [vmem:[#allocation2] sm:$0xff] 0.0
        $region56: #{tpu_custom_call.1} parent=39 // pred_fallthru
          _
        %v349 = vld [vmem:[%s281] sm:$0xff]
        %v350 = vpack.c.bf16 %v349, %v349
        %v351 = vld [vmem:[%s290] sm:$0xff]
        %v352 = vld [vmem:[%s290 + $0x8] sm:$0xff]
        %v353 = vld [vmem:[%s290 + $0x10] sm:$0xff]
        %v354 = vld [vmem:[%s290 + $0x18] sm:$0xff]
        %v355 = vld [vmem:[%s290 + $0x20] sm:$0xff]
        %v356 = vld [vmem:[%s290 + $0x28] sm:$0xff]
        %v357 = vld [vmem:[%s290 + $0x30] sm:$0xff]
        %v358 = vld [vmem:[%s290 + $0x38] sm:$0xff]
        %v359 = vld [vmem:[%s290 + $0x40] sm:$0xff]
        %v360 = vld [vmem:[%s290 + $0x48] sm:$0xff]
        %v361 = vld [vmem:[%s290 + $0x50] sm:$0xff]
        %v362 = vld [vmem:[%s290 + $0x58] sm:$0xff]
        %v363 = vld [vmem:[%s290 + $0x60] sm:$0xff]
        %v364 = vld [vmem:[%s290 + $0x68] sm:$0xff]
        %v365 = vld [vmem:[%s290 + $0x70] sm:$0xff]
        %v366 = vld [vmem:[%s290 + $0x78] sm:$0xff]
        %v367 = vpack.c.bf16 %v352, %v351
        %v368 = vpack.c.bf16 %v354, %v353
        %v369 = vpack.c.bf16 %v356, %v355
        %v370 = vpack.c.bf16 %v358, %v357
        %v371 = vpack.c.bf16 %v360, %v359
        %v372 = vpack.c.bf16 %v362, %v361
        %v373 = vpack.c.bf16 %v364, %v363
        %v374 = vpack.c.bf16 %v366, %v365
        %v375 = vld [vmem:[%s341] sm:$0x1]
        %v377 = vlaneseq
        %v378 = vshrl.u32 %v377, 7
        %v379 = vsub.s32 0, %v378
        %v380 = vrot.slane %v375, %v379
        %382 = vmatprep.subr.bf16.mxu0 0
        %383 = vmatpush1.bf16.msra.mxu0 %v367
        %384 = vmatprep.subr.bf16.mxu0 0
        %385 = vmatpush1.bf16.msra.mxu0 %v368
        %386 = vmatprep.subr.bf16.mxu0 0
        %387 = vmatpush1.bf16.msra.mxu0 %v369
        %388 = vmatprep.subr.bf16.mxu0 0
        %389 = vmatpush1.bf16.msra.mxu0 %v370
        %390 = vmatprep.subr.bf16.mxu0 0
        %391 = vmatpush1.bf16.msra.mxu0 %v371
        %392 = vmatprep.subr.bf16.mxu0 0
        %393 = vmatpush1.bf16.msra.mxu0 %v372
        %394 = vmatprep.subr.bf16.mxu0 0
        %395 = vmatpush1.bf16.msra.mxu0 %v373
        %396 = vmatprep.subr.bf16.mxu0 0
        %397 = vmatpush1.bf16.msra.mxu0 %v374
        %398 = vmatprep.subr.bf16.mxu0 0
        %399 = vmatpush1.bf16.msra.mxu0 0
        %400 = vmatprep.subr.bf16.mxu0 0
        %401 = vmatpush1.bf16.msra.mxu0 0
        %402 = vmatprep.subr.bf16.mxu0 0
        %403 = vmatpush1.bf16.msra.mxu0 0
        %404 = vmatprep.subr.bf16.mxu0 0
        %405 = vmatpush1.bf16.msra.mxu0 0
        %406 = vmatprep.subr.bf16.mxu0 0
        %407 = vmatpush1.bf16.msra.mxu0 0
        %408 = vmatprep.subr.bf16.mxu0 0
        %409 = vmatpush1.bf16.msra.mxu0 0
        %410 = vmatprep.subr.bf16.mxu0 0
        %411 = vmatpush1.bf16.msra.mxu0 0
        %412 = vmatprep.subr.bf16.mxu0 0
        %413 = vmatpush1.bf16.msra.mxu0 0
        %414 = vmatprep.mubr.bf16.mxu0 0
        %415 = vmatmul.mubr.bf16.gmra.mrb[0].mxu0 %v350
        %v416 = vpop.f32.mrb[0].mxu0
        %v417 = vadd.f32 %v380, %v416
        %v418 = vpop.f32.mrb[0].mxu0
        %v419 = vpop.f32.mrb[0].mxu0
        %v420 = vpop.f32.mrb[0].mxu0
        %421 = vdwg.mxu0
        %v422 = vmul.f32 %v417, 0.5
        %v423 = vmul.f32 %v417, 0.70710677
        %v424 = verf.f32.pop %v423
        %v425 = vadd.f32 %v424, 1.0
        %v426 = vmul.f32 %v422, %v425
        %v427 = vld [vmem:[%s299] sm:$0xff]
        %v428 = vld [vmem:[%s299 + $0x8] sm:$0xff]
        %v429 = vld [vmem:[%s299 + $0x10] sm:$0xff]
        %v430 = vld [vmem:[%s299 + $0x18] sm:$0xff]
        %v431 = vld [vmem:[%s299 + $0x20] sm:$0xff]
        %v432 = vld [vmem:[%s299 + $0x28] sm:$0xff]
        %v433 = vld [vmem:[%s299 + $0x30] sm:$0xff]
        %v434 = vld [vmem:[%s299 + $0x38] sm:$0xff]
        %v435 = vld [vmem:[%s299 + $0x40] sm:$0xff]
        %v436 = vld [vmem:[%s299 + $0x48] sm:$0xff]
        %v437 = vld [vmem:[%s299 + $0x50] sm:$0xff]
        %v438 = vld [vmem:[%s299 + $0x58] sm:$0xff]
        %v439 = vld [vmem:[%s299 + $0x60] sm:$0xff]
        %v440 = vld [vmem:[%s299 + $0x68] sm:$0xff]
        %v441 = vld [vmem:[%s299 + $0x70] sm:$0xff]
        %v442 = vld [vmem:[%s299 + $0x78] sm:$0xff]
        %v443 = vpack.c.bf16 %v428, %v427
        %v444 = vpack.c.bf16 %v430, %v429
        %v445 = vpack.c.bf16 %v432, %v431
        %v446 = vpack.c.bf16 %v434, %v433
        %v447 = vpack.c.bf16 %v436, %v435
        %v448 = vpack.c.bf16 %v438, %v437
        %v449 = vpack.c.bf16 %v440, %v439
        %v450 = vpack.c.bf16 %v442, %v441
        %v451 = vld [vmem:[#allocation2] sm:$0xff]
        %v452 = vpack.c.bf16 %v426, %v426
        %453 = vmatprep.subr.bf16.mxu0 0
        %454 = vmatpush1.bf16.msra.mxu0 %v443
        %455 = vmatprep.subr.bf16.mxu0 0
        %456 = vmatpush1.bf16.msra.mxu0 %v444
        %457 = vmatprep.subr.bf16.mxu0 0
        %458 = vmatpush1.bf16.msra.mxu0 %v445
        %459 = vmatprep.subr.bf16.mxu0 0
        %460 = vmatpush1.bf16.msra.mxu0 %v446
        %461 = vmatprep.subr.bf16.mxu0 0
        %462 = vmatpush1.bf16.msra.mxu0 %v447
        %463 = vmatprep.subr.bf16.mxu0 0
        %464 = vmatpush1.bf16.msra.mxu0 %v448
        %465 = vmatprep.subr.bf16.mxu0 0
        %466 = vmatpush1.bf16.msra.mxu0 %v449
        %467 = vmatprep.subr.bf16.mxu0 0
        %468 = vmatpush1.bf16.msra.mxu0 %v450
        %469 = vmatprep.subr.bf16.mxu0 0
        %470 = vmatpush1.bf16.msra.mxu0 0
        %471 = vmatprep.subr.bf16.mxu0 0
        %472 = vmatpush1.bf16.msra.mxu0 0
        %473 = vmatprep.subr.bf16.mxu0 0
        %474 = vmatpush1.bf16.msra.mxu0 0
        %475 = vmatprep.subr.bf16.mxu0 0
        %476 = vmatpush1.bf16.msra.mxu0 0
        %477 = vmatprep.subr.bf16.mxu0 0
        %478 = vmatpush1.bf16.msra.mxu0 0
        %479 = vmatprep.subr.bf16.mxu0 0
        %480 = vmatpush1.bf16.msra.mxu0 0
        %481 = vmatprep.subr.bf16.mxu0 0
        %482 = vmatpush1.bf16.msra.mxu0 0
        %483 = vmatprep.subr.bf16.mxu0 0
        %484 = vmatpush1.bf16.msra.mxu0 0
        %485 = vmatprep.mubr.bf16.mxu0 0
        %486 = vmatmul.mubr.bf16.gmra.mrb[0].mxu0 %v452
        %v487 = vpop.f32.mrb[0].mxu0
        %v488 = vadd.f32 0.0, %v487
        %v489 = vpop.f32.mrb[0].mxu0
        %v490 = vpop.f32.mrb[0].mxu0
        %v491 = vpop.f32.mrb[0].mxu0
        %492 = vdwg.mxu0
        %v493 = vadd.f32 %v451, %v488
        %494 = vst [vmem:[#allocation2] sm:$0xff] %v493
        %p495 = scmp.eq.s32.totalorder %s30, 1
        // Predicated region
        $region57: #{tpu_custom_call.1} parent=39 // pred_check
          %p496 = pneg %p495
        $region58: #{tpu_custom_call.1} parent=39 // pred_check_branch
          %498 = sbr.rel (%p496) target = $region60
        $region59: #{tpu_custom_call.1} parent=39 // pred_region
          %v499 = vld [vmem:[#allocation2] sm:$0xff]
          %v500 = vld [vmem:[%s4] sm:$0x1]
          %v502 = vlaneseq
          %v503 = vshrl.u32 %v502, 7
          %v504 = vsub.s32 0, %v503
          %v505 = vrot.slane %v500, %v504
          %v507 = vadd.f32 %v499, %v505
          %508 = vst [vmem:[%s338] sm:$0xff] %v507
        $region60: #{tpu_custom_call.1} parent=39 // pred_fallthru
          _
        %s509 = sand.u32 %s170, 1
        %s510 = scalar_lea.sflag [#allocation5], %s509
        %s511 = sand.u32 %s170, 1
        %s512 = smul.addr %s511, 8
        %s513 = scalar_lea.vmem [#allocation9], %s512
        // Predicated region
        $region61: #{tpu_custom_call.1} parent=39 // pred_check
          %p514 = pneg %p180
        $region62: #{tpu_custom_call.1} parent=39 // pred_check_branch
          %516 = sbr.rel (%p514) target = $region64
        $region63: #{tpu_custom_call.1} parent=39 // pred_region
          %s518 = ssub.s32 128, 128
          %519 = vsyncadd %s510, %s518
          %s520 = smul.addr %s29, 128
          %s521 = scalar_lea.hbm %s5, %s520
          %s523 = sshll.u32 %s513, 4
          %s524 = int_to_ptr.vmem [resolvable:$true] %s523
          %526 = dma.vmem_to_hbm [thread:$0]  %s524, 128, %s521, %s510
        $region64: #{tpu_custom_call.1} parent=39 // pred_fallthru
          _
      $region40: #{tpu_custom_call.1} parent=5 // pred_fallthru
        _
      %p527 = scmp.le.s32.totalorder 2, %s20
      // Predicated region
      $region65: #{tpu_custom_call.1} parent=5 // pred_check
        %p528 = pneg %p527
      $region66: #{tpu_custom_call.1} parent=5 // pred_check_branch
        %530 = sbr.rel (%p528) target = $region68
      $region67: #{tpu_custom_call.1} parent=5 // pred_region
        %s531 = ssub.s32 %s20, 2
        // Predicated region
        $region69: #{tpu_custom_call.1} parent=67 // pred_check
          %p532 = pneg %p186
        $region70: #{tpu_custom_call.1} parent=67 // pred_check_branch
          %534 = sbr.rel (%p532) target = $region72
        $region71: #{tpu_custom_call.1} parent=67 // pred_region
          %s535 = sand.u32 %s171, 1
          %s536 = scalar_lea.sflag [#allocation5], %s535
          %s537 = sand.u32 %s171, 1
          %s538 = smul.addr %s537, 8
          %s539 = scalar_lea.vmem [#allocation9], %s538
          %540 = dma.done %s536, 128
        $region72: #{tpu_custom_call.1} parent=67 // pred_fallthru
          _
      $region68: #{tpu_custom_call.1} parent=5 // pred_fallthru
        _
    $region6: #{tpu_custom_call.1} parent=1 // loop_footer
      %s24 = sadd.s32 1, %s20
    $region7: #{tpu_custom_call.1} parent=1 // loop_footer_branch
      %19 = sbr.rel target = $region3
    $region8: #{tpu_custom_call.1} parent=1 // loop_exit
      _
    %541 = vsyncpa [#allocation4], 1
    %s542 = scalar_lea.sflag [#allocation4], 1
    %543 = vsyncpa %s542, 1
    %544 = vsyncpa [#allocation7], 1
    %s545 = scalar_lea.sflag [#allocation7], 1
    %546 = vsyncpa %s545, 1
    %547 = vsyncpa [#allocation5], 1
    %s548 = scalar_lea.sflag [#allocation5], 1
    %549 = vsyncpa %s548, 1

</llo_original>
